<compile_context>
chip_gen: v7x
topology: tpu7x:2x2x1
jax: 0.10.0
libtpu: 0.0.40
codegen_flags: <defaults>
</compile_context>

<pallas_src>
import functools

import jax
import jax.numpy as jnp
from jax import lax
from jax.experimental import pallas as pl
from jax.experimental.pallas import tpu as pltpu

_NEG_LARGE = -1e30  # Python float -> embedded literal (NOT a captured jnp const)


def _atc_kernel(*refs, B, N, TB, TN, has_targets):
    if has_targets:
        (a2t_ref, t2a_ref, tgt_ref, out_ref,
         m0, l0, w0, m1, l1, w1, t_sc) = refs
    else:
        (a2t_ref, t2a_ref, out_ref,
         m0, l0, w0, m1, l1, w1) = refs
        tgt_ref = None
        t_sc = None

    i = pl.program_id(0)
    j = pl.program_id(1)
    nj = pl.num_programs(1)

    cols_even = (N % TN == 0)   # trace-time specialization flags
    rows_even = (B % TB == 0)
    n_diag = min(B, N)

    @pl.when(j == 0)
    def _init():
        for m, l, w in ((m0, l0, w0), (m1, l1, w1)):
            m[...] = jnp.full(m.shape, _NEG_LARGE, jnp.float32)
            l[...] = jnp.zeros(l.shape, jnp.float32)
            w[...] = jnp.zeros(w.shape, jnp.float32)
        if has_targets:
            t_sc[...] = jnp.zeros(t_sc.shape, jnp.float32)

    def _lse_update(m, l, sim):
        m_prev = m[...]                                     # (TB, 1)
        m_new = jnp.maximum(m_prev, jnp.max(sim, axis=1, keepdims=True))
        l[...] = (l[...] * jnp.exp(m_prev - m_new)
                  + jnp.sum(jnp.exp(sim - m_new), axis=1, keepdims=True))
        m[...] = m_new

    def _step(edge):
        a2t = a2t_ref[...].astype(jnp.float32)
        t2a = t2a_ref[...].astype(jnp.float32)
        if edge:
            # Lane-only column mask, broadcast over rows (only on the edge block).
            col_ok = (j * TN
                      + lax.broadcasted_iota(jnp.int32, (1, TN), 1)) < N
            a2t = jnp.where(col_ok, a2t, _NEG_LARGE)
            t2a = jnp.where(col_ok, t2a, _NEG_LARGE)

        _lse_update(m0, l0, a2t)   # audio -> text
        _lse_update(m1, l1, t2a)   # text  -> audio

        if has_targets:
            tgt = tgt_ref[...].astype(jnp.float32)
            if edge:
                tgt = jnp.where(col_ok, tgt, 0.0)
            w0[...] += jnp.sum(a2t * tgt, axis=1, keepdims=True)
            w1[...] += jnp.sum(t2a * tgt, axis=1, keepdims=True)
            t_sc[...] += jnp.sum(tgt, axis=1, keepdims=True)
        else:
            # Identity-targets fast path: only tiles intersecting the diagonal.
            diag_hit = (i * TB < (j + 1) * TN) & (j * TN < i * TB + TB)

            @pl.when(diag_hit)
            def _diag():
                rows = i * TB + lax.broadcasted_iota(jnp.int32, (TB, TN), 0)
                cols = j * TN + lax.broadcasted_iota(jnp.int32, (TB, TN), 1)
                dmask = rows == cols
                if edge:
                    dmask = dmask & (cols < N)
                w0[...] += jnp.sum(jnp.where(dmask, a2t, 0.0),
                                   axis=1, keepdims=True)
                w1[...] += jnp.sum(jnp.where(dmask, t2a, 0.0),
                                   axis=1, keepdims=True)

    if cols_even:
        _step(edge=False)
    else:
        @pl.when(j < nj - 1)
        def _interior():
            _step(edge=False)

        @pl.when(j == nj - 1)
        def _edge():
            _step(edge=True)

    @pl.when(j == nj - 1)
    def _finalize():
        lse0 = m0[...] + jnp.log(l0[...])
        lse1 = m1[...] + jnp.log(l1[...])
        if has_targets:
            tsum = t_sc[...]
            neg = -((w0[...] - lse0 * tsum) + (w1[...] - lse1 * tsum))
        elif rows_even and N >= B:
            neg = -((w0[...] - lse0) + (w1[...] - lse1))   # sum(tgt,1) == 1
        else:
            row1 = i * TB + lax.broadcasted_iota(jnp.int32, (TB, 1), 0)
            tsum = jnp.where(row1 < n_diag, 1.0, 0.0)
            neg = -((w0[...] - lse0 * tsum) + (w1[...] - lse1 * tsum))
        if rows_even:
            out_ref[...] = neg
        else:
            row_v = i * TB + lax.broadcasted_iota(jnp.int32, (TB, 1), 0)
            out_ref[...] = jnp.where(row_v < B, neg, 0.0)


def _round_up(x, m):
    return ((x + m - 1) // m) * m


def audio_text_contrastive_loss(sim_a2t, sim_t2a, sim_targets=None,
                                *, block_rows=256, block_cols=None):
    B, N = sim_a2t.shape
    assert sim_t2a.shape == (B, N), (sim_a2t.shape, sim_t2a.shape)
    has_targets = sim_targets is not None
    if has_targets:
        assert sim_targets.shape == (B, N)

    # Generation-aware VMEM budget (fallback = v7x worst case, 64 MiB / TC).
    try:
        vmem_cap = int(pltpu.get_tpu_info().vmem_capacity_bytes)
    except Exception:
        vmem_cap = 64 * 1024 * 1024
    vmem_budget = min(vmem_cap // 3, 48 * 1024 * 1024)

    total_itemsize = (jnp.dtype(sim_a2t.dtype).itemsize
                      + jnp.dtype(sim_t2a.dtype).itemsize)
    if has_targets:
        total_itemsize += jnp.dtype(sim_targets.dtype).itemsize

    # Row tile: split so at least 2 row blocks exist (both v7x TCs get work),
    # multiple of 8 unless it is the full extent.
    TB = min(block_rows, _round_up(max(pl.cdiv(B, 2), 1), 8))
    if TB >= B:
        TB = B

    # Column tile: lane axis, multiple of 128 (or full extent); sized so the
    # double-buffered input tiles fit the VMEM budget on every generation.
    cap = max(128, (vmem_budget // max(2 * TB * total_itemsize, 1)) // 128 * 128)
    tn_cap = min(block_cols, cap) if block_cols is not None else min(cap, 4096)
    TN = N if N <= tn_cap else tn_cap

    grid = (pl.cdiv(B, TB), pl.cdiv(N, TN))

    kernel = functools.partial(_atc_kernel, B=B, N=N, TB=TB, TN=TN,
                               has_targets=has_targets)

    in_specs = [pl.BlockSpec((TB, TN), lambda i, j: (i, j)),
                pl.BlockSpec((TB, TN), lambda i, j: (i, j))]
    inputs = [sim_a2t, sim_t2a]          # native dtype; cast to f32 in-kernel
    if has_targets:
        in_specs.append(pl.BlockSpec((TB, TN), lambda i, j: (i, j)))
        inputs.append(sim_targets)

    scratch_shapes = [pltpu.VMEM((TB, 1), jnp.float32) for _ in range(6)]
    if has_targets:
        scratch_shapes.append(pltpu.VMEM((TB, 1), jnp.float32))  # sum(tgt)

    tile_bytes = 2 * TB * TN * total_itemsize   # double-buffered input tiles
    vmem_limit = int(min(max(32 * 1024 * 1024, 2 * tile_bytes),
                         max(vmem_cap - 16 * 1024 * 1024, 32 * 1024 * 1024)))

    per_row = pl.pallas_call(
        kernel,
        out_shape=jax.ShapeDtypeStruct((B, 1), jnp.float32),
        grid_spec=pltpu.PrefetchScalarGridSpec(
            num_scalar_prefetch=0,
            grid=grid,
            in_specs=in_specs,
            out_specs=pl.BlockSpec((TB, 1), lambda i, j: (i, 0)),
            scratch_shapes=scratch_shapes,
        ),
        compiler_params=pltpu.CompilerParams(
            dimension_semantics=("parallel", "arbitrary"),
            vmem_limit_bytes=vmem_limit,
        ),
    )(*inputs)

    # Tiny final reduction + 1/(2B) normalization (true global B).
    return jnp.sum(per_row) / jnp.float32(2 * B)


def _reference_loss(sim_a2t, sim_t2a, sim_targets=None):
    B, N = sim_a2t.shape
    if sim_targets is None:
        sim_targets = jnp.eye(B, N, dtype=jnp.float32)
    sim_targets = sim_targets.astype(jnp.float32)
    la = -jnp.sum(jax.nn.log_softmax(sim_a2t.astype(jnp.float32), axis=1)
                  * sim_targets, axis=1).mean()
    lt = -jnp.sum(jax.nn.log_softmax(sim_t2a.astype(jnp.float32), axis=1)
                  * sim_targets, axis=1).mean()
    return (la + lt) / 2.0


if __name__ == "__main__":
    key = jax.random.PRNGKey(0)
    k1, k2, k3, k4, k5 = jax.random.split(key, 5)

    # 1) Small square case (contrastive sims are (batch, batch)), identity targets.
    B = 8
    sim_a2t = jax.random.normal(k1, (B, B), dtype=jnp.float32) * 5.0
    sim_t2a = jax.random.normal(k2, (B, B), dtype=jnp.float32) * 5.0
    loss = jax.block_until_ready(audio_text_contrastive_loss(sim_a2t, sim_t2a))
    ref = _reference_loss(sim_a2t, sim_t2a)
    assert jnp.isfinite(loss), "kernel produced non-finite loss"
    assert jnp.allclose(loss, ref, rtol=2e-5, atol=1e-4), (loss, ref)

    # 2) Explicit (soft) targets path.
    tgt = jax.nn.softmax(jax.random.normal(k3, (B, B), dtype=jnp.float32), axis=1)
    loss2 = jax.block_until_ready(audio_text_contrastive_loss(sim_a2t, sim_t2a, tgt))
    ref2 = _reference_loss(sim_a2t, sim_t2a, tgt)
    assert jnp.allclose(loss2, ref2, rtol=2e-5, atol=1e-4), (loss2, ref2)

    # 3) Tiled online-softmax path with a partial edge column block (forced tiles).
    B2 = 200
    a2 = jax.random.normal(k4, (B2, B2), dtype=jnp.float32) * 5.0
    t2 = jax.random.normal(k5, (B2, B2), dtype=jnp.float32) * 5.0
    loss3 = jax.block_until_ready(
        audio_text_contrastive_loss(a2, t2, block_rows=8, block_cols=128))
    ref3 = _reference_loss(a2, t2)
    assert jnp.allclose(loss3, ref3, rtol=2e-5, atol=1e-4), (loss3, ref3)

    # 4) Non multiple-of-8 batch, default (megacore-split) tiling, partial row block.
    B3 = 52
    a3, t3 = a2[:B3, :B3], t2[:B3, :B3]
    loss4 = jax.block_until_ready(audio_text_contrastive_loss(a3, t3))
    ref4 = _reference_loss(a3, t3)
    assert jnp.allclose(loss4, ref4, rtol=2e-5, atol=1e-4), (loss4, ref4)

    # 5) Native bf16 inputs (cast to f32 happens in-kernel on the VPU).
    a5 = sim_a2t.astype(jnp.bfloat16)
    t5 = sim_t2a.astype(jnp.bfloat16)
    loss5 = jax.block_until_ready(audio_text_contrastive_loss(a5, t5))
    ref5 = _reference_loss(a5, t5)
    assert jnp.allclose(loss5, ref5, rtol=2e-5, atol=1e-4), (loss5, ref5)

    print("KERNEL_OK")
</pallas_src>

<mosaic_0001>
module attributes {stable_mosaic.version = 11 : i64} {
  func.func @_atc_kernel(%arg0: i32, %arg1: i32, %arg2: memref<8x8xf32, #tpu.memory_space<vmem>>, %arg3: memref<8x8xf32, #tpu.memory_space<vmem>>, %arg4: memref<8x1xf32, #tpu.memory_space<vmem>>, %arg5: memref<8x1xf32, #tpu.memory_space<vmem>>, %arg6: memref<8x1xf32, #tpu.memory_space<vmem>>, %arg7: memref<8x1xf32, #tpu.memory_space<vmem>>, %arg8: memref<8x1xf32, #tpu.memory_space<vmem>>, %arg9: memref<8x1xf32, #tpu.memory_space<vmem>>, %arg10: memref<8x1xf32, #tpu.memory_space<vmem>>) attributes {dimension_semantics = [#tpu.dimension_semantics<parallel>, #tpu.dimension_semantics<arbitrary>], iteration_bounds = array<i64: 1, 1>, scalar_prefetch = 0 : i64, scratch_operands = 6 : i64, tpu.core_type = #tpu.core_type<tc>, window_params = [{transform_indices = @transform_0, window_bounds = array<i64: 8, 8>}, {transform_indices = @transform_1, window_bounds = array<i64: 8, 8>}, {transform_indices = @transform_2, window_bounds = array<i64: 8, 1>}]} {
    %c0_i32 = arith.constant 0 : i32
    %0 = arith.cmpi eq, %arg1, %c0_i32 : i32
    %1 = arith.extui %0 : i1 to i32
    %c0_i32_0 = arith.constant 0 : i32
    %2 = arith.cmpi ne, %1, %c0_i32_0 : i32
    scf.if %2 {
      %cst_30 = arith.constant -1.000000e+30 : f32
      %51 = vector.broadcast %cst_30 : f32 to vector<8x1xf32>
      %c0_31 = arith.constant 0 : index
      %c0_32 = arith.constant 0 : index
      %52 = vector.load %arg5[%c0_31, %c0_32] : memref<8x1xf32, #tpu.memory_space<vmem>>, vector<8x1xf32>
      tpu.vector_store %arg5[%c0_31, %c0_32], %51 {strides = array<i32>} : memref<8x1xf32, #tpu.memory_space<vmem>>, vector<8x1xf32>,
      %cst_33 = arith.constant 0.000000e+00 : f32
      %53 = vector.broadcast %cst_33 : f32 to vector<8x1xf32>
      %c0_34 = arith.constant 0 : index
      %c0_35 = arith.constant 0 : index
      %54 = vector.load %arg6[%c0_34, %c0_35] : memref<8x1xf32, #tpu.memory_space<vmem>>, vector<8x1xf32>
      tpu.vector_store %arg6[%c0_34, %c0_35], %53 {strides = array<i32>} : memref<8x1xf32, #tpu.memory_space<vmem>>, vector<8x1xf32>,
      %cst_36 = arith.constant 0.000000e+00 : f32
      %55 = vector.broadcast %cst_36 : f32 to vector<8x1xf32>
      %c0_37 = arith.constant 0 : index
      %c0_38 = arith.constant 0 : index
      %56 = vector.load %arg7[%c0_37, %c0_38] : memref<8x1xf32, #tpu.memory_space<vmem>>, vector<8x1xf32>
      tpu.vector_store %arg7[%c0_37, %c0_38], %55 {strides = array<i32>} : memref<8x1xf32, #tpu.memory_space<vmem>>, vector<8x1xf32>,
      %cst_39 = arith.constant -1.000000e+30 : f32
      %57 = vector.broadcast %cst_39 : f32 to vector<8x1xf32>
      %c0_40 = arith.constant 0 : index
      %c0_41 = arith.constant 0 : index
      %58 = vector.load %arg8[%c0_40, %c0_41] : memref<8x1xf32, #tpu.memory_space<vmem>>, vector<8x1xf32>
      tpu.vector_store %arg8[%c0_40, %c0_41], %57 {strides = array<i32>} : memref<8x1xf32, #tpu.memory_space<vmem>>, vector<8x1xf32>,
      %cst_42 = arith.constant 0.000000e+00 : f32
      %59 = vector.broadcast %cst_42 : f32 to vector<8x1xf32>
      %c0_43 = arith.constant 0 : index
      %c0_44 = arith.constant 0 : index
      %60 = vector.load %arg9[%c0_43, %c0_44] : memref<8x1xf32, #tpu.memory_space<vmem>>, vector<8x1xf32>
      tpu.vector_store %arg9[%c0_43, %c0_44], %59 {strides = array<i32>} : memref<8x1xf32, #tpu.memory_space<vmem>>, vector<8x1xf32>,
      %cst_45 = arith.constant 0.000000e+00 : f32
      %61 = vector.broadcast %cst_45 : f32 to vector<8x1xf32>
      %c0_46 = arith.constant 0 : index
      %c0_47 = arith.constant 0 : index
      %62 = vector.load %arg10[%c0_46, %c0_47] : memref<8x1xf32, #tpu.memory_space<vmem>>, vector<8x1xf32>
      tpu.vector_store %arg10[%c0_46, %c0_47], %61 {strides = array<i32>} : memref<8x1xf32, #tpu.memory_space<vmem>>, vector<8x1xf32>,
    } else {
    }
    %c0 = arith.constant 0 : index
    %c0_1 = arith.constant 0 : index
    %3 = vector.load %arg2[%c0, %c0_1] : memref<8x8xf32, #tpu.memory_space<vmem>>, vector<8x8xf32>
    %c0_2 = arith.constant 0 : index
    %c0_3 = arith.constant 0 : index
    %4 = vector.load %arg3[%c0_2, %c0_3] : memref<8x8xf32, #tpu.memory_space<vmem>>, vector<8x8xf32>
    %c0_4 = arith.constant 0 : index
    %c0_5 = arith.constant 0 : index
    %5 = vector.load %arg5[%c0_4, %c0_5] : memref<8x1xf32, #tpu.memory_space<vmem>>, vector<8x1xf32>
    %cst = arith.constant dense<0xFF800000> : vector<8xf32>
    %6 = vector.multi_reduction <maximumf>, %3, %cst [1] : vector<8x8xf32> to vector<8xf32>
    %7 = vector.shape_cast %6 : vector<8xf32> to vector<8x1xf32>
    %8 = arith.maximumf %5, %7 : vector<8x1xf32>
    %c0_6 = arith.constant 0 : index
    %c0_7 = arith.constant 0 : index
    %9 = vector.load %arg6[%c0_6, %c0_7] : memref<8x1xf32, #tpu.memory_space<vmem>>, vector<8x1xf32>
    %10 = arith.subf %5, %8 : vector<8x1xf32>
    %11 = math.exp %10 : vector<8x1xf32>
    %12 = arith.mulf %9, %11 : vector<8x1xf32>
    %13 = vector.broadcast %8 : vector<8x1xf32> to vector<8x8xf32>
    %14 = arith.subf %3, %13 : vector<8x8xf32>
    %15 = math.exp %14 : vector<8x8xf32>
    %cst_8 = arith.constant dense<0.000000e+00> : vector<8xf32>
    %16 = vector.multi_reduction <add>, %15, %cst_8 [1] : vector<8x8xf32> to vector<8xf32>
    %17 = vector.shape_cast %16 : vector<8xf32> to vector<8x1xf32>
    %18 = arith.addf %12, %17 : vector<8x1xf32>
    %c0_9 = arith.constant 0 : index
    %c0_10 = arith.constant 0 : index
    %19 = vector.load %arg6[%c0_9, %c0_10] : memref<8x1xf32, #tpu.memory_space<vmem>>, vector<8x1xf32>
    tpu.vector_store %arg6[%c0_9, %c0_10], %18 {strides = array<i32>} : memref<8x1xf32, #tpu.memory_space<vmem>>, vector<8x1xf32>,
    %c0_11 = arith.constant 0 : index
    %c0_12 = arith.constant 0 : index
    %20 = vector.load %arg5[%c0_11, %c0_12] : memref<8x1xf32, #tpu.memory_space<vmem>>, vector<8x1xf32>
    tpu.vector_store %arg5[%c0_11, %c0_12], %8 {strides = array<i32>} : memref<8x1xf32, #tpu.memory_space<vmem>>, vector<8x1xf32>,
    %c0_13 = arith.constant 0 : index
    %c0_14 = arith.constant 0 : index
    %21 = vector.load %arg8[%c0_13, %c0_14] : memref<8x1xf32, #tpu.memory_space<vmem>>, vector<8x1xf32>
    %cst_15 = arith.constant dense<0xFF800000> : vector<8xf32>
    %22 = vector.multi_reduction <maximumf>, %4, %cst_15 [1] : vector<8x8xf32> to vector<8xf32>
    %23 = vector.shape_cast %22 : vector<8xf32> to vector<8x1xf32>
    %24 = arith.maximumf %21, %23 : vector<8x1xf32>
    %c0_16 = arith.constant 0 : index
    %c0_17 = arith.constant 0 : index
    %25 = vector.load %arg9[%c0_16, %c0_17] : memref<8x1xf32, #tpu.memory_space<vmem>>, vector<8x1xf32>
    %26 = arith.subf %21, %24 : vector<8x1xf32>
    %27 = math.exp %26 : vector<8x1xf32>
    %28 = arith.mulf %25, %27 : vector<8x1xf32>
    %29 = vector.broadcast %24 : vector<8x1xf32> to vector<8x8xf32>
    %30 = arith.subf %4, %29 : vector<8x8xf32>
    %31 = math.exp %30 : vector<8x8xf32>
    %cst_18 = arith.constant dense<0.000000e+00> : vector<8xf32>
    %32 = vector.multi_reduction <add>, %31, %cst_18 [1] : vector<8x8xf32> to vector<8xf32>
    %33 = vector.shape_cast %32 : vector<8xf32> to vector<8x1xf32>
    %34 = arith.addf %28, %33 : vector<8x1xf32>
    %c0_19 = arith.constant 0 : index
    %c0_20 = arith.constant 0 : index
    %35 = vector.load %arg9[%c0_19, %c0_20] : memref<8x1xf32, #tpu.memory_space<vmem>>, vector<8x1xf32>
    tpu.vector_store %arg9[%c0_19, %c0_20], %34 {strides = array<i32>} : memref<8x1xf32, #tpu.memory_space<vmem>>, vector<8x1xf32>,
    %c0_21 = arith.constant 0 : index
    %c0_22 = arith.constant 0 : index
    %36 = vector.load %arg8[%c0_21, %c0_22] : memref<8x1xf32, #tpu.memory_space<vmem>>, vector<8x1xf32>
    tpu.vector_store %arg8[%c0_21, %c0_22], %24 {strides = array<i32>} : memref<8x1xf32, #tpu.memory_space<vmem>>, vector<8x1xf32>,
    %c8_i32 = arith.constant 8 : i32
    %37 = arith.muli %arg0, %c8_i32 : i32
    %c1_i32 = arith.constant 1 : i32
    %38 = arith.addi %arg1, %c1_i32 : i32
    %c8_i32_23 = arith.constant 8 : i32
    %39 = arith.muli %38, %c8_i32_23 : i32
    %40 = arith.cmpi slt, %37, %39 : i32
    %c8_i32_24 = arith.constant 8 : i32
    %41 = arith.muli %arg1, %c8_i32_24 : i32
    %c8_i32_25 = arith.constant 8 : i32
    %42 = arith.muli %arg0, %c8_i32_25 : i32
    %c8_i32_26 = arith.constant 8 : i32
    %43 = arith.addi %42, %c8_i32_26 : i32
    %44 = arith.cmpi slt, %41, %43 : i32
    %45 = arith.andi %40, %44 : i1
    %46 = arith.extui %45 : i1 to i32
    %c0_i32_27 = arith.constant 0 : i32
    %47 = arith.cmpi ne, %46, %c0_i32_27 : i32
    scf.if %47 {
      %c8_i32_30 = arith.constant 8 : i32
      %51 = arith.muli %arg0, %c8_i32_30 : i32
      %52 = tpu.iota {dimensions = array<i32: 0>} : vector<8x8xi32>
      %53 = vector.broadcast %51 : i32 to vector<8x8xi32>
      %54 = arith.addi %53, %52 : vector<8x8xi32>
      %c8_i32_31 = arith.constant 8 : i32
      %55 = arith.muli %arg1, %c8_i32_31 : i32
      %56 = tpu.iota {dimensions = array<i32: 1>} : vector<8x8xi32>
      %57 = vector.broadcast %55 : i32 to vector<8x8xi32>
      %58 = arith.addi %57, %56 : vector<8x8xi32>
      %59 = arith.cmpi eq, %54, %58 : vector<8x8xi32>
      %c0_32 = arith.constant 0 : index
      %c0_33 = arith.constant 0 : index
      %60 = vector.load %arg7[%c0_32, %c0_33] : memref<8x1xf32, #tpu.memory_space<vmem>>, vector<8x1xf32>
      %cst_34 = arith.constant 0.000000e+00 : f32
      %61 = vector.broadcast %cst_34 : f32 to vector<8x8xf32>
      %62 = arith.select %59, %3, %61 : vector<8x8xi1>, vector<8x8xf32>
      %cst_35 = arith.constant dense<0.000000e+00> : vector<8xf32>
      %63 = vector.multi_reduction <add>, %62, %cst_35 [1] : vector<8x8xf32> to vector<8xf32>
      %64 = vector.shape_cast %63 : vector<8xf32> to vector<8x1xf32>
      %65 = arith.addf %60, %64 : vector<8x1xf32>
      %c0_36 = arith.constant 0 : index
      %c0_37 = arith.constant 0 : index
      %66 = vector.load %arg7[%c0_36, %c0_37] : memref<8x1xf32, #tpu.memory_space<vmem>>, vector<8x1xf32>
      tpu.vector_store %arg7[%c0_36, %c0_37], %65 {strides = array<i32>} : memref<8x1xf32, #tpu.memory_space<vmem>>, vector<8x1xf32>,
      %c0_38 = arith.constant 0 : index
      %c0_39 = arith.constant 0 : index
      %67 = vector.load %arg10[%c0_38, %c0_39] : memref<8x1xf32, #tpu.memory_space<vmem>>, vector<8x1xf32>
      %cst_40 = arith.constant 0.000000e+00 : f32
      %68 = vector.broadcast %cst_40 : f32 to vector<8x8xf32>
      %69 = arith.select %59, %4, %68 : vector<8x8xi1>, vector<8x8xf32>
      %cst_41 = arith.constant dense<0.000000e+00> : vector<8xf32>
      %70 = vector.multi_reduction <add>, %69, %cst_41 [1] : vector<8x8xf32> to vector<8xf32>
      %71 = vector.shape_cast %70 : vector<8xf32> to vector<8x1xf32>
      %72 = arith.addf %67, %71 : vector<8x1xf32>
      %c0_42 = arith.constant 0 : index
      %c0_43 = arith.constant 0 : index
      %73 = vector.load %arg10[%c0_42, %c0_43] : memref<8x1xf32, #tpu.memory_space<vmem>>, vector<8x1xf32>
      tpu.vector_store %arg10[%c0_42, %c0_43], %72 {strides = array<i32>} : memref<8x1xf32, #tpu.memory_space<vmem>>, vector<8x1xf32>,
    } else {
    }
    %c0_i32_28 = arith.constant 0 : i32
    %48 = arith.cmpi eq, %arg1, %c0_i32_28 : i32
    %49 = arith.extui %48 : i1 to i32
    %c0_i32_29 = arith.constant 0 : i32
    %50 = arith.cmpi ne, %49, %c0_i32_29 : i32
    scf.if %50 {
      %c0_30 = arith.constant 0 : index
      %c0_31 = arith.constant 0 : index
      %51 = vector.load %arg5[%c0_30, %c0_31] : memref<8x1xf32, #tpu.memory_space<vmem>>, vector<8x1xf32>
      %c0_32 = arith.constant 0 : index
      %c0_33 = arith.constant 0 : index
      %52 = vector.load %arg6[%c0_32, %c0_33] : memref<8x1xf32, #tpu.memory_space<vmem>>, vector<8x1xf32>
      %53 = math.log %52 : vector<8x1xf32>
      %54 = arith.addf %51, %53 : vector<8x1xf32>
      %c0_34 = arith.constant 0 : index
      %c0_35 = arith.constant 0 : index
      %55 = vector.load %arg8[%c0_34, %c0_35] : memref<8x1xf32, #tpu.memory_space<vmem>>, vector<8x1xf32>
      %c0_36 = arith.constant 0 : index
      %c0_37 = arith.constant 0 : index
      %56 = vector.load %arg9[%c0_36, %c0_37] : memref<8x1xf32, #tpu.memory_space<vmem>>, vector<8x1xf32>
      %57 = math.log %56 : vector<8x1xf32>
      %58 = arith.addf %55, %57 : vector<8x1xf32>
      %c0_38 = arith.constant 0 : index
      %c0_39 = arith.constant 0 : index
      %59 = vector.load %arg7[%c0_38, %c0_39] : memref<8x1xf32, #tpu.memory_space<vmem>>, vector<8x1xf32>
      %60 = arith.subf %59, %54 : vector<8x1xf32>
      %c0_40 = arith.constant 0 : index
      %c0_41 = arith.constant 0 : index
      %61 = vector.load %arg10[%c0_40, %c0_41] : memref<8x1xf32, #tpu.memory_space<vmem>>, vector<8x1xf32>
      %62 = arith.subf %61, %58 : vector<8x1xf32>
      %63 = arith.addf %60, %62 : vector<8x1xf32>
      %cst_42 = arith.constant 0.000000e+00 : f32
      %64 = vector.broadcast %cst_42 : f32 to vector<8x1xf32>
      %65 = arith.subf %64, %63 : vector<8x1xf32>
      %c0_43 = arith.constant 0 : index
      %c0_44 = arith.constant 0 : index
      %66 = vector.load %arg4[%c0_43, %c0_44] : memref<8x1xf32, #tpu.memory_space<vmem>>, vector<8x1xf32>
      tpu.vector_store %arg4[%c0_43, %c0_44], %65 {strides = array<i32>} : memref<8x1xf32, #tpu.memory_space<vmem>>, vector<8x1xf32>,
    } else {
    }
    return
  }
  func.func @transform_0(%arg0: i32, %arg1: i32) -> (i32, i32) {
    %c0_i32 = arith.constant 0 : i32
    return %arg0, %arg1 : i32, i32
  }
  func.func @transform_1(%arg0: i32, %arg1: i32) -> (i32, i32) {
    %c0_i32 = arith.constant 0 : i32
    return %arg0, %arg1 : i32, i32
  }
  func.func @transform_2(%arg0: i32, %arg1: i32) -> (i32, i32) {
    %c0_i32 = arith.constant 0 : i32
    %c0_i32_0 = arith.constant 0 : i32
    return %arg0, %c0_i32 : i32, i32
  }
}

</mosaic_0001>

<llo_original>
// kernel: tpu_custom_call.1
$region0: #{tpu_custom_call.1}
  #allocation0 [shape = 'u32[]', space=smem, size = 0x4, offset = 0x4, fixed_abs, tag = 'smem constant byte address 0x4 - core index']
  #allocation1 [shape = 'u32[144,128]{1,0:T(1,128)}', space=vmem, size = 0x12000, scoped, tag = 'internal scratch']
  #allocation2 [shape = 'f32[8,1]{1,0:T(8,128)}', space=vmem, size = 0x1000, scoped, tag = 'scratch operand']
  #allocation3 [shape = 'f32[8,1]{1,0:T(8,128)}', space=vmem, size = 0x1000, scoped, tag = 'scratch operand']
  #allocation4 [shape = 'f32[8,1]{1,0:T(8,128)}', space=vmem, size = 0x1000, scoped, tag = 'scratch operand']
  #allocation5 [shape = 'f32[8,1]{1,0:T(8,128)}', space=vmem, size = 0x1000, scoped, tag = 'scratch operand']
  #allocation6 [shape = 'f32[8,1]{1,0:T(8,128)}', space=vmem, size = 0x1000, scoped, tag = 'scratch operand']
  #allocation7 [shape = 'f32[8,1]{1,0:T(8,128)}', space=vmem, size = 0x1000, scoped, tag = 'scratch operand']
  %s0 = inlined_call_operand.hbm [shape: f32[8,8], index: 0, kind: input, shape index: {}]
  %s1 = inlined_call_operand.hbm [shape: f32[8,8], index: 1, kind: input, shape index: {}]
  %s2 = inlined_call_operand.vmem [shape: f32[8,1], index: 2, kind: output, shape index: {}]
  %s3 = sld [smem:[#allocation0]]
  $region38: #{tpu_custom_call.1} parent=0
    _
  %s5 = ssub.s32 1, %s3
  %s6 = scalar_select 0, %s5, %s3
  $region1: #{tpu_custom_call.1} parent=0
    #allocation8 [shape = 'u8[4096]{0}', space=vmem, size = 0x1000, scoped, tag = 'input window, operand 0, single buffered']
    #allocation9 [shape = 's32[1]{0}', space=sflag, size = 0x4, scoped, tag = 'scoped memory for tpu_custom_call.1']
    #allocation10 [shape = 'u8[4096]{0}', space=vmem, size = 0x1000, scoped, tag = 'input window, operand 1, single buffered']
    #allocation11 [shape = 's32[1]{0}', space=sflag, size = 0x4, scoped, tag = 'scoped memory for tpu_custom_call.1']
    %7 = vsyncpa [#allocation9], 0
    %8 = vsyncpa [#allocation11], 0
    // Predicated region
    $region2: #{tpu_custom_call.1} parent=1 // pred_check
      _
    $region3: #{tpu_custom_call.1} parent=1 // pred_check_branch
      %10 = sbr.rel (0) target = $region5
    $region4: #{tpu_custom_call.1} parent=1 // pred_region
      %s12 = ssub.s32 128, 128
      %13 = vsyncadd [#allocation9], %s12
      %s15 = sshll.u32 [#allocation8], 4
      %s16 = int_to_ptr.vmem [resolvable:$true] %s15
      %18 = dma.hbm_to_vmem [thread:$0]  %s0, 128, %s16, [#allocation9]
    $region5: #{tpu_custom_call.1} parent=1 // pred_fallthru
      _
    // Predicated region
    $region6: #{tpu_custom_call.1} parent=1 // pred_check
      _
    $region7: #{tpu_custom_call.1} parent=1 // pred_check_branch
      %20 = sbr.rel (0) target = $region9
    $region8: #{tpu_custom_call.1} parent=1 // pred_region
      %s22 = ssub.s32 128, 128
      %23 = vsyncadd [#allocation11], %s22
      %s25 = sshll.u32 [#allocation10], 4
      %s26 = int_to_ptr.vmem [resolvable:$true] %s25
      %28 = dma.hbm_to_vmem [thread:$0]  %s1, 128, %s26, [#allocation11]
    $region9: #{tpu_custom_call.1} parent=1 // pred_fallthru
      _
    // Predicated region
    $region10: #{tpu_custom_call.1} parent=1 // pred_check
      _
    $region11: #{tpu_custom_call.1} parent=1 // pred_check_branch
      %30 = sbr.rel (0) target = $region13
    $region12: #{tpu_custom_call.1} parent=1 // pred_region
      %31 = dma.done [#allocation9], 128
    $region13: #{tpu_custom_call.1} parent=1 // pred_fallthru
      _
    // Predicated region
    $region14: #{tpu_custom_call.1} parent=1 // pred_check
      _
    $region15: #{tpu_custom_call.1} parent=1 // pred_check_branch
      %33 = sbr.rel (0) target = $region17
    $region16: #{tpu_custom_call.1} parent=1 // pred_region
      %34 = dma.done [#allocation11], 128
    $region17: #{tpu_custom_call.1} parent=1 // pred_fallthru
      _
    %p35 = scmp.eq.s32.totalorder 0, 0
    // Predicated region
    $region18: #{tpu_custom_call.1} parent=1 // pred_check
      %p36 = pneg %p35
    $region19: #{tpu_custom_call.1} parent=1 // pred_check_branch
      %38 = sbr.rel (%p36) target = $region21
    $region20: #{tpu_custom_call.1} parent=1 // pred_region
      %vm39 = vcmask 7168
      %40 = vst.msk [vmem:[#allocation2] sm:$0xff] %vm39, -1e+30
      %41 = vst.msk [vmem:[#allocation3] sm:$0xff] %vm39, 0.0
      %42 = vst.msk [vmem:[#allocation4] sm:$0xff] %vm39, 0.0
      %43 = vst.msk [vmem:[#allocation5] sm:$0xff] %vm39, -1e+30
      %44 = vst.msk [vmem:[#allocation6] sm:$0xff] %vm39, 0.0
      %45 = vst.msk [vmem:[#allocation7] sm:$0xff] %vm39, 0.0
    $region21: #{tpu_custom_call.1} parent=1 // pred_fallthru
      _
    %v46 = vld [vmem:[#allocation8] sm:$0xff]
    %v47 = vld [vmem:[#allocation10] sm:$0xff]
    %v48 = vld [vmem:[#allocation2] sm:$0xff]
    %vm49 = vcmask 64512
    %v50 = vsel %vm49, %v46, -inf
    %51 = vmax.xlane.f32.xlu0 %v50
    %v52 = vpop.xlane.xlu0 %51
    %v53 = vmax.f32 %v48, %v52
    %v54 = vld [vmem:[#allocation3] sm:$0xff]
    %v55 = vsub.f32 %v48, %v53
    %v56 = vmul.f32 %v55, 1.442695
    %v57 = vpow.pop %v56
    %v58 = vmul.f32 %v54, %v57
    %60 = vset.pattern.permute.xlu0 0
    %61 = vperm.xlu0 %60, %v53
    %v62 = vpop.permute.xlu0 %61
    %v64 = vsub.f32 %v46, %v62
    %v65 = vmul.f32 %v64, 1.442695
    %v66 = vpow.pop %v65
    %v67 = vsel %vm49, %v66, 0.0
    %68 = vadd.xlane.f32.xlu0 %v67
    %v69 = vpop.xlane.xlu0 %68
    %v70 = vadd.f32 %v58, %v69
    %vm71 = vcmask 7168
    %72 = vst.msk [vmem:[#allocation3] sm:$0xff] %vm71, %v70
    %73 = vst.msk [vmem:[#allocation2] sm:$0xff] %vm71, %v53
    %v74 = vld [vmem:[#allocation5] sm:$0xff]
    %v75 = vsel %vm49, %v47, -inf
    %76 = vmax.xlane.f32.xlu0 %v75
    %v77 = vpop.xlane.xlu0 %76
    %v78 = vmax.f32 %v74, %v77
    %v79 = vld [vmem:[#allocation6] sm:$0xff]
    %v80 = vsub.f32 %v74, %v78
    %v81 = vmul.f32 %v80, 1.442695
    %v82 = vpow.pop %v81
    %v83 = vmul.f32 %v79, %v82
    %85 = vset.pattern.permute.xlu0 0
    %86 = vperm.xlu0 %85, %v78
    %v87 = vpop.permute.xlu0 %86
    %v89 = vsub.f32 %v47, %v87
    %v90 = vmul.f32 %v89, 1.442695
    %v91 = vpow.pop %v90
    %v92 = vsel %vm49, %v91, 0.0
    %93 = vadd.xlane.f32.xlu0 %v92
    %v94 = vpop.xlane.xlu0 %93
    %v95 = vadd.f32 %v83, %v94
    %96 = vst.msk [vmem:[#allocation6] sm:$0xff] %vm71, %v95
    %97 = vst.msk [vmem:[#allocation5] sm:$0xff] %vm71, %v78
    %s98 = smul.u32 0, 8
    %s99 = sadd.s32 0, 1
    %s100 = smul.u32 %s99, 8
    %p101 = scmp.lt.s32.totalorder %s98, %s100
    %s102 = smul.u32 0, 8
    %s103 = sadd.s32 %s98, 8
    %p104 = scmp.lt.s32.totalorder %s102, %s103
    %p105 = pnand %p101, %p104
    %p106 = pneg %p105
    // Predicated region
    $region22: #{tpu_custom_call.1} parent=1 // pred_check
      _
    $region23: #{tpu_custom_call.1} parent=1 // pred_check_branch
      %108 = sbr.rel (%p105) target = $region25
    $region24: #{tpu_custom_call.1} parent=1 // pred_region
      %v109 = vlaneseq
      %v110 = vshrl.u32 %v109, 7
      %v111 = vstv %s98
      %v112 = vadd.s32 %v111, %v110
      %v113 = vlaneseq
      %v114 = vand.u32 %v113, 127
      %v115 = vstv %s102
      %v116 = vadd.s32 %v115, %v114
      %vm117 = vcmp.eq.s32.totalorder %v112, %v116
      %v118 = vld [vmem:[#allocation4] sm:$0xff]
      %v119 = vsel %vm117, %v46, 0.0
      %v120 = vsel %vm49, %v119, 0.0
      %121 = vadd.xlane.f32.xlu0 %v120
      %v122 = vpop.xlane.xlu0 %121
      %v123 = vadd.f32 %v118, %v122
      %124 = vst.msk [vmem:[#allocation4] sm:$0xff] %vm71, %v123
      %v125 = vld [vmem:[#allocation7] sm:$0xff]
      %v126 = vsel %vm117, %v47, 0.0
      %v127 = vsel %vm49, %v126, 0.0
      %128 = vadd.xlane.f32.xlu0 %v127
      %v129 = vpop.xlane.xlu0 %128
      %v130 = vadd.f32 %v125, %v129
      %131 = vst.msk [vmem:[#allocation7] sm:$0xff] %vm71, %v130
    $region25: #{tpu_custom_call.1} parent=1 // pred_fallthru
      _
    // Predicated region
    $region26: #{tpu_custom_call.1} parent=1 // pred_check
      %p132 = pneg %p35
    $region27: #{tpu_custom_call.1} parent=1 // pred_check_branch
      %134 = sbr.rel (%p132) target = $region29
    $region28: #{tpu_custom_call.1} parent=1 // pred_region
      %v135 = vld [vmem:[#allocation2] sm:$0xff]
      %v136 = vld [vmem:[#allocation3] sm:$0xff]
      %v137 = vlog2.pop %v136
      %v138 = vmul.f32 %v137, 0.6931472
      %v139 = vadd.f32 %v135, %v138
      %v140 = vld [vmem:[#allocation5] sm:$0xff]
      %v141 = vld [vmem:[#allocation6] sm:$0xff]
      %v142 = vlog2.pop %v141
      %v143 = vmul.f32 %v142, 0.6931472
      %v144 = vadd.f32 %v140, %v143
      %v145 = vld [vmem:[#allocation4] sm:$0xff]
      %v146 = vsub.f32 %v145, %v139
      %v147 = vld [vmem:[#allocation7] sm:$0xff]
      %v148 = vsub.f32 %v147, %v144
      %v149 = vadd.f32 %v146, %v148
      %v150 = vsub.f32 0.0, %v149
      %151 = vst.msk [vmem:[%s2] sm:$0xff] %vm71, %v150
    $region29: #{tpu_custom_call.1} parent=1 // pred_fallthru
      _
    // Predicated region
    $region30: #{tpu_custom_call.1} parent=1 // pred_check
      _
    $region31: #{tpu_custom_call.1} parent=1 // pred_check_branch
      %153 = sbr.rel (0) target = $region33
    $region32: #{tpu_custom_call.1} parent=1 // pred_region
      _
    $region33: #{tpu_custom_call.1} parent=1 // pred_fallthru
      _
    // Predicated region
    $region34: #{tpu_custom_call.1} parent=1 // pred_check
      _
    $region35: #{tpu_custom_call.1} parent=1 // pred_check_branch
      %155 = sbr.rel (0) target = $region37
    $region36: #{tpu_custom_call.1} parent=1 // pred_region
      _
    $region37: #{tpu_custom_call.1} parent=1 // pred_fallthru
      _
    %156 = vsyncpa [#allocation9], 1
    %157 = vsyncpa [#allocation11], 1

</llo_original>
